<compile_context>
chip_gen: v5e
topology: v5e:2x2
jax: 0.10.0
libtpu: 0.0.40
codegen_flags: <defaults>
</compile_context>

<pallas_src>
import jax
import jax.numpy as jnp
from jax.experimental import pallas as pl
from jax.experimental.pallas import tpu as pltpu


def ncf_kernel(u_ref, v_ref,                               # (dim, TILE_B) embedding tiles
               w1u_ref, w1v_ref, b1_ref,
               w2_ref, b2_ref, w3_ref, b3_ref, w4_ref, b4_ref,
               whg_ref, whm_ref, bh_ref,
               out_ref):                                   # (1, TILE_B) lane-dense block
    u = u_ref[...]                                         # (dim, TILE_B) f32
    v = v_ref[...]

    # GMF branch: elementwise product.
    gmf = u * v                                            # (dim, TILE_B)

    # MLP branch.  concat([u, v]) @ W1^T == W1u @ u + W1v @ v  (no concat).
    y = jnp.maximum(
        jnp.dot(w1u_ref[...], u, preferred_element_type=jnp.float32)
        + jnp.dot(w1v_ref[...], v, preferred_element_type=jnp.float32)
        + b1_ref[...], 0.0)                                # (32, TILE_B)
    y = jnp.maximum(jnp.dot(w2_ref[...], y, preferred_element_type=jnp.float32)
                    + b2_ref[...], 0.0)                    # (16, TILE_B)
    y = jnp.maximum(jnp.dot(w3_ref[...], y, preferred_element_type=jnp.float32)
                    + b3_ref[...], 0.0)                    # (8, TILE_B)
    y = jnp.maximum(jnp.dot(w4_ref[...], y, preferred_element_type=jnp.float32)
                    + b4_ref[...], 0.0)                    # (8, TILE_B)

    # Head.  concat([gmf, y]) @ Wh^T == Whg @ gmf + Whm @ y.  Result already
    # lane-dense (1, TILE_B) -> unmasked 128-lane store, no relayout.
    logit = (jnp.dot(whg_ref[...], gmf, preferred_element_type=jnp.float32)
             + jnp.dot(whm_ref[...], y, preferred_element_type=jnp.float32)
             + bh_ref[...])                                # (1,1) broadcasts
    out_ref[...] = jax.nn.sigmoid(logit)                   # (1, TILE_B)


def ncf_forward(pairs, embedding_matrix, params, *, tile_b=1024):
    """pairs: int32 [B, 2]; embedding_matrix: f32 [N, dim] -> sigmoid scores [B]."""
    assert tile_b % 128 == 0, "tile_b must be a multiple of 128 (lane width)"
    B = pairs.shape[0]
    dim = embedding_matrix.shape[1]

    users = pairs[:, 0].astype(jnp.int32)
    items = pairs[:, 1].astype(jnp.int32)

    # Gather in the wrapper (regular XLA gather) and transpose to a lane-dense
    # (dim, B) layout; the Pallas pipeline then streams (dim, tile_b) tiles.
    u = jnp.take(embedding_matrix, users, axis=0).T.astype(jnp.float32)
    v = jnp.take(embedding_matrix, items, axis=0).T.astype(jnp.float32)

    num_tiles = pl.cdiv(B, tile_b)
    b_pad = num_tiles * tile_b
    if b_pad != B:                                         # ragged last tile -> zero-pad
        pad = b_pad - B
        u = jnp.pad(u, ((0, 0), (0, pad)))
        v = jnp.pad(v, ((0, 0), (0, pad)))

    p = params
    weight_args = (p["w1u"], p["w1v"], p["b1"],
                   p["w2"], p["b2"], p["w3"], p["b3"],
                   p["w4"], p["b4"],
                   p["whg"], p["whm"], p["bh"])

    # Weights are tiny and grid-invariant: constant index_map -> DMA'd once.
    def pinned(w):
        return pl.BlockSpec(w.shape, lambda i: (0, 0))

    emb_spec = pl.BlockSpec((dim, tile_b), lambda i: (0, i))

    per_sample_flops = (4 * dim * 32 + 2 * 32 * 16 + 2 * 16 * 8 + 2 * 8 * 8
                        + 2 * (dim + 8) + dim)
    weight_bytes = sum(int(w.size) * 4 for w in weight_args)
    cost = pl.CostEstimate(
        flops=per_sample_flops * b_pad,
        transcendentals=b_pad,                             # one sigmoid per sample
        bytes_accessed=b_pad * (2 * dim + 1) * 4 + weight_bytes)

    out = pl.pallas_call(
        ncf_kernel,
        out_shape=jax.ShapeDtypeStruct((1, b_pad), jnp.float32),
        grid=(num_tiles,),
        in_specs=[emb_spec, emb_spec] + [pinned(w) for w in weight_args],
        out_specs=pl.BlockSpec((1, tile_b), lambda i: (0, i)),
        compiler_params=pltpu.CompilerParams(
            dimension_semantics=("parallel",),             # batch axis: megacore-shardable
        ),
        cost_estimate=cost,
    )(u, v, *weight_args)

    return out.reshape(-1)[:B]                             # .view(-1), drop padding


def init_params(key, dim):
    """PyTorch-Linear-style uniform init, kept in PyTorch (out, in) weight layout
    and (out, 1) column biases so the kernel computes W @ X directly.
    w1 and wh are pre-split to match the concat orders [u, v] and [gmf, mlp]."""
    def linear(key, fan_in, fan_out):
        kw, kb = jax.random.split(key)
        bound = 1.0 / jnp.sqrt(jnp.float32(fan_in))
        w = jax.random.uniform(kw, (fan_out, fan_in), jnp.float32, -bound, bound)
        b = jax.random.uniform(kb, (fan_out, 1), jnp.float32, -bound, bound)
        return w, b

    keys = jax.random.split(key, 5)
    w1, b1 = linear(keys[0], 2 * dim, 32)
    w2, b2 = linear(keys[1], 32, 16)
    w3, b3 = linear(keys[2], 16, 8)
    w4, b4 = linear(keys[3], 8, 8)
    wh, bh = linear(keys[4], dim + 8, 1)                   # wh: (1, dim+8), bh: (1, 1)
    return dict(
        w1u=w1[:, :dim], w1v=w1[:, dim:], b1=b1,           # split of concat([u, v]) weight
        w2=w2, b2=b2, w3=w3, b3=b3, w4=w4, b4=b4,
        whg=wh[:, :dim], whm=wh[:, dim:], bh=bh,           # split of concat([gmf, mlp]) weight
    )


def ncf_reference(pairs, embedding_matrix, p):
    """Pure-JAX reference mirroring the PyTorch forward (reconstructs the concats)."""
    u = embedding_matrix[pairs[:, 0]]
    v = embedding_matrix[pairs[:, 1]]
    gmf = u * v
    x = jnp.concatenate([u, v], axis=1)
    w1 = jnp.concatenate([p["w1u"], p["w1v"]], axis=1)     # (32, 2*dim) PyTorch layout
    y = jax.nn.relu(x @ w1.T + p["b1"].reshape(-1))
    y = jax.nn.relu(y @ p["w2"].T + p["b2"].reshape(-1))
    y = jax.nn.relu(y @ p["w3"].T + p["b3"].reshape(-1))
    y = jax.nn.relu(y @ p["w4"].T + p["b4"].reshape(-1))
    feat = jnp.concatenate([gmf, y], axis=1)
    wh = jnp.concatenate([p["whg"], p["whm"]], axis=1)     # (1, dim+8)
    logit = feat @ wh.T + p["bh"].reshape(-1)
    return jax.nn.sigmoid(logit).reshape(-1)


# TODO(synk): get_scores / ctr_eval / topk_eval are host-side Python evaluation
# loops (dict sorting, sklearn metrics) with no kernel equivalent; only the
# forward pass is implemented here.

if __name__ == "__main__":
    key = jax.random.PRNGKey(0)
    k_emb, k_par, k_pairs = jax.random.split(key, 3)

    dim = 16            # embedding dimension
    n_entities = 64     # rows in the shared embedding matrix
    batch = 200         # not a multiple of the tile -> exercises padding path

    embedding_matrix = jax.random.normal(k_emb, (n_entities, dim), jnp.float32)
    params = init_params(k_par, dim)
    pairs = jax.random.randint(k_pairs, (batch, 2), 0, n_entities, jnp.int32)

    # tile_b=128 keeps the demo small (2 grid steps); default is 1024 for real batches.
    predicts = ncf_forward(pairs, embedding_matrix, params, tile_b=128)
    predicts = jax.block_until_ready(predicts)

    ref = ncf_reference(pairs, embedding_matrix, params)
    assert predicts.shape == (batch,)
    # f32 MXU matmuls vs XLA's dot differ slightly in accumulation order; sigmoid
    # outputs agree to well under 1e-4.
    assert jnp.allclose(predicts, ref, atol=1e-4, rtol=1e-4), float(
        jnp.max(jnp.abs(predicts - ref)))

    print("KERNEL_OK")
</pallas_src>

<mosaic_0001>
module attributes {stable_mosaic.version = 11 : i64} {
  func.func @ncf_kernel(%arg0: i32, %arg1: memref<16x128xf32, #tpu.memory_space<vmem>>, %arg2: memref<16x128xf32, #tpu.memory_space<vmem>>, %arg3: memref<32x16xf32, #tpu.memory_space<vmem>>, %arg4: memref<32x16xf32, #tpu.memory_space<vmem>>, %arg5: memref<32x1xf32, #tpu.memory_space<vmem>>, %arg6: memref<16x32xf32, #tpu.memory_space<vmem>>, %arg7: memref<16x1xf32, #tpu.memory_space<vmem>>, %arg8: memref<8x16xf32, #tpu.memory_space<vmem>>, %arg9: memref<8x1xf32, #tpu.memory_space<vmem>>, %arg10: memref<8x8xf32, #tpu.memory_space<vmem>>, %arg11: memref<8x1xf32, #tpu.memory_space<vmem>>, %arg12: memref<1x16xf32, #tpu.memory_space<vmem>>, %arg13: memref<1x8xf32, #tpu.memory_space<vmem>>, %arg14: memref<1x1xf32, #tpu.memory_space<vmem>>, %arg15: memref<1x128xf32, #tpu.memory_space<vmem>>) attributes {dimension_semantics = [#tpu.dimension_semantics<parallel>], iteration_bounds = array<i64: 2>, scalar_prefetch = 0 : i64, scratch_operands = 0 : i64, tpu.core_type = #tpu.core_type<tc>, window_params = [{transform_indices = @transform_0, window_bounds = array<i64: 16, 128>}, {transform_indices = @transform_1, window_bounds = array<i64: 16, 128>}, {pipeline_mode = #tpu.pipeline_mode<synchronous>, transform_indices = @transform_2, window_bounds = array<i64: 32, 16>}, {pipeline_mode = #tpu.pipeline_mode<synchronous>, transform_indices = @transform_3, window_bounds = array<i64: 32, 16>}, {pipeline_mode = #tpu.pipeline_mode<synchronous>, transform_indices = @transform_4, window_bounds = array<i64: 32, 1>}, {pipeline_mode = #tpu.pipeline_mode<synchronous>, transform_indices = @transform_5, window_bounds = array<i64: 16, 32>}, {pipeline_mode = #tpu.pipeline_mode<synchronous>, transform_indices = @transform_6, window_bounds = array<i64: 16, 1>}, {pipeline_mode = #tpu.pipeline_mode<synchronous>, transform_indices = @transform_7, window_bounds = array<i64: 8, 16>}, {pipeline_mode = #tpu.pipeline_mode<synchronous>, transform_indices = @transform_8, window_bounds = array<i64: 8, 1>}, {pipeline_mode = #tpu.pipeline_mode<synchronous>, transform_indices = @transform_9, window_bounds = array<i64: 8, 8>}, {pipeline_mode = #tpu.pipeline_mode<synchronous>, transform_indices = @transform_10, window_bounds = array<i64: 8, 1>}, {pipeline_mode = #tpu.pipeline_mode<synchronous>, transform_indices = @transform_11, window_bounds = array<i64: 1, 16>}, {pipeline_mode = #tpu.pipeline_mode<synchronous>, transform_indices = @transform_12, window_bounds = array<i64: 1, 8>}, {pipeline_mode = #tpu.pipeline_mode<synchronous>, transform_indices = @transform_13, window_bounds = array<i64: 1, 1>}, {transform_indices = @transform_14, window_bounds = array<i64: 1, 128>}]} {
    %c0 = arith.constant 0 : index
    %c0_0 = arith.constant 0 : index
    %0 = vector.load %arg1[%c0, %c0_0] : memref<16x128xf32, #tpu.memory_space<vmem>>, vector<16x128xf32>
    %c0_1 = arith.constant 0 : index
    %c0_2 = arith.constant 0 : index
    %1 = vector.load %arg2[%c0_1, %c0_2] : memref<16x128xf32, #tpu.memory_space<vmem>>, vector<16x128xf32>
    %2 = arith.mulf %0, %1 : vector<16x128xf32>
    %c0_3 = arith.constant 0 : index
    %c0_4 = arith.constant 0 : index
    %3 = vector.load %arg3[%c0_3, %c0_4] : memref<32x16xf32, #tpu.memory_space<vmem>>, vector<32x16xf32>
    %cst = arith.constant dense<0.000000e+00> : vector<32x128xf32>
    %4 = tpu.matmul %3, %0, %cst {dimension_numbers = #tpu.dot_dimension_numbers<[1], [0], [0], [1], [0, 0, 1, 1], [], []>} : vector<32x16xf32>, vector<16x128xf32>, vector<32x128xf32> -> vector<32x128xf32>
    %c0_5 = arith.constant 0 : index
    %c0_6 = arith.constant 0 : index
    %5 = vector.load %arg4[%c0_5, %c0_6] : memref<32x16xf32, #tpu.memory_space<vmem>>, vector<32x16xf32>
    %cst_7 = arith.constant dense<0.000000e+00> : vector<32x128xf32>
    %6 = tpu.matmul %5, %1, %cst_7 {dimension_numbers = #tpu.dot_dimension_numbers<[1], [0], [0], [1], [0, 0, 1, 1], [], []>} : vector<32x16xf32>, vector<16x128xf32>, vector<32x128xf32> -> vector<32x128xf32>
    %7 = arith.addf %4, %6 : vector<32x128xf32>
    %c0_8 = arith.constant 0 : index
    %c0_9 = arith.constant 0 : index
    %8 = vector.load %arg5[%c0_8, %c0_9] : memref<32x1xf32, #tpu.memory_space<vmem>>, vector<32x1xf32>
    %9 = vector.broadcast %8 : vector<32x1xf32> to vector<32x128xf32>
    %10 = arith.addf %7, %9 : vector<32x128xf32>
    %cst_10 = arith.constant 0.000000e+00 : f32
    %11 = vector.broadcast %cst_10 : f32 to vector<32x128xf32>
    %12 = arith.maximumf %10, %11 : vector<32x128xf32>
    %c0_11 = arith.constant 0 : index
    %c0_12 = arith.constant 0 : index
    %13 = vector.load %arg6[%c0_11, %c0_12] : memref<16x32xf32, #tpu.memory_space<vmem>>, vector<16x32xf32>
    %cst_13 = arith.constant dense<0.000000e+00> : vector<16x128xf32>
    %14 = tpu.matmul %13, %12, %cst_13 {dimension_numbers = #tpu.dot_dimension_numbers<[1], [0], [0], [1], [0, 0, 1, 1], [], []>} : vector<16x32xf32>, vector<32x128xf32>, vector<16x128xf32> -> vector<16x128xf32>
    %c0_14 = arith.constant 0 : index
    %c0_15 = arith.constant 0 : index
    %15 = vector.load %arg7[%c0_14, %c0_15] : memref<16x1xf32, #tpu.memory_space<vmem>>, vector<16x1xf32>
    %16 = vector.broadcast %15 : vector<16x1xf32> to vector<16x128xf32>
    %17 = arith.addf %14, %16 : vector<16x128xf32>
    %cst_16 = arith.constant 0.000000e+00 : f32
    %18 = vector.broadcast %cst_16 : f32 to vector<16x128xf32>
    %19 = arith.maximumf %17, %18 : vector<16x128xf32>
    %c0_17 = arith.constant 0 : index
    %c0_18 = arith.constant 0 : index
    %20 = vector.load %arg8[%c0_17, %c0_18] : memref<8x16xf32, #tpu.memory_space<vmem>>, vector<8x16xf32>
    %cst_19 = arith.constant dense<0.000000e+00> : vector<8x128xf32>
    %21 = tpu.matmul %20, %19, %cst_19 {dimension_numbers = #tpu.dot_dimension_numbers<[1], [0], [0], [1], [0, 0, 1, 1], [], []>} : vector<8x16xf32>, vector<16x128xf32>, vector<8x128xf32> -> vector<8x128xf32>
    %c0_20 = arith.constant 0 : index
    %c0_21 = arith.constant 0 : index
    %22 = vector.load %arg9[%c0_20, %c0_21] : memref<8x1xf32, #tpu.memory_space<vmem>>, vector<8x1xf32>
    %23 = vector.broadcast %22 : vector<8x1xf32> to vector<8x128xf32>
    %24 = arith.addf %21, %23 : vector<8x128xf32>
    %cst_22 = arith.constant 0.000000e+00 : f32
    %25 = vector.broadcast %cst_22 : f32 to vector<8x128xf32>
    %26 = arith.maximumf %24, %25 : vector<8x128xf32>
    %c0_23 = arith.constant 0 : index
    %c0_24 = arith.constant 0 : index
    %27 = vector.load %arg10[%c0_23, %c0_24] : memref<8x8xf32, #tpu.memory_space<vmem>>, vector<8x8xf32>
    %cst_25 = arith.constant dense<0.000000e+00> : vector<8x128xf32>
    %28 = tpu.matmul %27, %26, %cst_25 {dimension_numbers = #tpu.dot_dimension_numbers<[1], [0], [0], [1], [0, 0, 1, 1], [], []>} : vector<8x8xf32>, vector<8x128xf32>, vector<8x128xf32> -> vector<8x128xf32>
    %c0_26 = arith.constant 0 : index
    %c0_27 = arith.constant 0 : index
    %29 = vector.load %arg11[%c0_26, %c0_27] : memref<8x1xf32, #tpu.memory_space<vmem>>, vector<8x1xf32>
    %30 = vector.broadcast %29 : vector<8x1xf32> to vector<8x128xf32>
    %31 = arith.addf %28, %30 : vector<8x128xf32>
    %cst_28 = arith.constant 0.000000e+00 : f32
    %32 = vector.broadcast %cst_28 : f32 to vector<8x128xf32>
    %33 = arith.maximumf %31, %32 : vector<8x128xf32>
    %c0_29 = arith.constant 0 : index
    %c0_30 = arith.constant 0 : index
    %34 = vector.load %arg12[%c0_29, %c0_30] : memref<1x16xf32, #tpu.memory_space<vmem>>, vector<1x16xf32>
    %cst_31 = arith.constant dense<0.000000e+00> : vector<1x128xf32>
    %35 = tpu.matmul %34, %2, %cst_31 {dimension_numbers = #tpu.dot_dimension_numbers<[1], [0], [0], [1], [0, 0, 1, 1], [], []>} : vector<1x16xf32>, vector<16x128xf32>, vector<1x128xf32> -> vector<1x128xf32>
    %c0_32 = arith.constant 0 : index
    %c0_33 = arith.constant 0 : index
    %36 = vector.load %arg13[%c0_32, %c0_33] : memref<1x8xf32, #tpu.memory_space<vmem>>, vector<1x8xf32>
    %cst_34 = arith.constant dense<0.000000e+00> : vector<1x128xf32>
    %37 = tpu.matmul %36, %33, %cst_34 {dimension_numbers = #tpu.dot_dimension_numbers<[1], [0], [0], [1], [0, 0, 1, 1], [], []>} : vector<1x8xf32>, vector<8x128xf32>, vector<1x128xf32> -> vector<1x128xf32>
    %38 = arith.addf %35, %37 : vector<1x128xf32>
    %c0_35 = arith.constant 0 : index
    %c0_36 = arith.constant 0 : index
    %39 = vector.load %arg14[%c0_35, %c0_36] : memref<1x1xf32, #tpu.memory_space<vmem>>, vector<1x1xf32>
    %40 = vector.broadcast %39 : vector<1x1xf32> to vector<1x128xf32>
    %41 = arith.addf %38, %40 : vector<1x128xf32>
    %42 = arith.negf %41 : vector<1x128xf32>
    %43 = math.exp %42 : vector<1x128xf32>
    %cst_37 = arith.constant 1.000000e+00 : f32
    %44 = vector.broadcast %cst_37 : f32 to vector<1x128xf32>
    %45 = arith.addf %44, %43 : vector<1x128xf32>
    %46 = arith.divf %44, %45 : vector<1x128xf32>
    %c0_38 = arith.constant 0 : index
    %c0_39 = arith.constant 0 : index
    %47 = vector.load %arg15[%c0_38, %c0_39] : memref<1x128xf32, #tpu.memory_space<vmem>>, vector<1x128xf32>
    tpu.vector_store %arg15[%c0_38, %c0_39], %46 {strides = array<i32>} : memref<1x128xf32, #tpu.memory_space<vmem>>, vector<1x128xf32>,
    return
  }
  func.func @transform_0(%arg0: i32) -> (i32, i32) {
    %c0_i32 = arith.constant 0 : i32
    %c0_i32_0 = arith.constant 0 : i32
    return %c0_i32, %arg0 : i32, i32
  }
  func.func @transform_1(%arg0: i32) -> (i32, i32) {
    %c0_i32 = arith.constant 0 : i32
    %c0_i32_0 = arith.constant 0 : i32
    return %c0_i32, %arg0 : i32, i32
  }
  func.func @transform_2(%arg0: i32) -> (i32, i32) {
    %c0_i32 = arith.constant 0 : i32
    %c0_i32_0 = arith.constant 0 : i32
    %c0_i32_1 = arith.constant 0 : i32
    return %c0_i32, %c0_i32_0 : i32, i32
  }
  func.func @transform_3(%arg0: i32) -> (i32, i32) {
    %c0_i32 = arith.constant 0 : i32
    %c0_i32_0 = arith.constant 0 : i32
    %c0_i32_1 = arith.constant 0 : i32
    return %c0_i32, %c0_i32_0 : i32, i32
  }
  func.func @transform_4(%arg0: i32) -> (i32, i32) {
    %c0_i32 = arith.constant 0 : i32
    %c0_i32_0 = arith.constant 0 : i32
    %c0_i32_1 = arith.constant 0 : i32
    return %c0_i32, %c0_i32_0 : i32, i32
  }
  func.func @transform_5(%arg0: i32) -> (i32, i32) {
    %c0_i32 = arith.constant 0 : i32
    %c0_i32_0 = arith.constant 0 : i32
    %c0_i32_1 = arith.constant 0 : i32
    return %c0_i32, %c0_i32_0 : i32, i32
  }
  func.func @transform_6(%arg0: i32) -> (i32, i32) {
    %c0_i32 = arith.constant 0 : i32
    %c0_i32_0 = arith.constant 0 : i32
    %c0_i32_1 = arith.constant 0 : i32
    return %c0_i32, %c0_i32_0 : i32, i32
  }
  func.func @transform_7(%arg0: i32) -> (i32, i32) {
    %c0_i32 = arith.constant 0 : i32
    %c0_i32_0 = arith.constant 0 : i32
    %c0_i32_1 = arith.constant 0 : i32
    return %c0_i32, %c0_i32_0 : i32, i32
  }
  func.func @transform_8(%arg0: i32) -> (i32, i32) {
    %c0_i32 = arith.constant 0 : i32
    %c0_i32_0 = arith.constant 0 : i32
    %c0_i32_1 = arith.constant 0 : i32
    return %c0_i32, %c0_i32_0 : i32, i32
  }
  func.func @transform_9(%arg0: i32) -> (i32, i32) {
    %c0_i32 = arith.constant 0 : i32
    %c0_i32_0 = arith.constant 0 : i32
    %c0_i32_1 = arith.constant 0 : i32
    return %c0_i32, %c0_i32_0 : i32, i32
  }
  func.func @transform_10(%arg0: i32) -> (i32, i32) {
    %c0_i32 = arith.constant 0 : i32
    %c0_i32_0 = arith.constant 0 : i32
    %c0_i32_1 = arith.constant 0 : i32
    return %c0_i32, %c0_i32_0 : i32, i32
  }
  func.func @transform_11(%arg0: i32) -> (i32, i32) {
    %c0_i32 = arith.constant 0 : i32
    %c0_i32_0 = arith.constant 0 : i32
    %c0_i32_1 = arith.constant 0 : i32
    return %c0_i32, %c0_i32_0 : i32, i32
  }
  func.func @transform_12(%arg0: i32) -> (i32, i32) {
    %c0_i32 = arith.constant 0 : i32
    %c0_i32_0 = arith.constant 0 : i32
    %c0_i32_1 = arith.constant 0 : i32
    return %c0_i32, %c0_i32_0 : i32, i32
  }
  func.func @transform_13(%arg0: i32) -> (i32, i32) {
    %c0_i32 = arith.constant 0 : i32
    %c0_i32_0 = arith.constant 0 : i32
    %c0_i32_1 = arith.constant 0 : i32
    return %c0_i32, %c0_i32_0 : i32, i32
  }
  func.func @transform_14(%arg0: i32) -> (i32, i32) {
    %c0_i32 = arith.constant 0 : i32
    %c0_i32_0 = arith.constant 0 : i32
    return %c0_i32, %arg0 : i32, i32
  }
}

</mosaic_0001>

<llo_original>
// kernel: tpu_custom_call.1
$region0: #{tpu_custom_call.1}
  #allocation0 [shape = 'u32[]', space=smem, size = 0x4, offset = 0x4, fixed_abs, tag = 'smem constant byte address 0x4 - core index']
  #allocation1 [shape = 'u32[72,128]{1,0:T(1,128)}', space=vmem, size = 0x9000, scoped, tag = 'internal scratch']
  #allocation2 [shape = 'f32[1,1]{1,0:T(1,128)S(1)}', space=vmem, size = 0x200, scoped, tag = 'scoped memory for tpu_custom_call.1']
  %s0 = inlined_call_operand.vmem [shape: f32[16,256], index: 0, kind: input, shape index: {}]
  %s1 = inlined_call_operand.vmem [shape: f32[16,256], index: 1, kind: input, shape index: {}]
  %s2 = inlined_call_operand.vmem [shape: f32[32,16], index: 2, kind: input, shape index: {}]
  %s3 = inlined_call_operand.vmem [shape: f32[32,16], index: 3, kind: input, shape index: {}]
  %s4 = inlined_call_operand.vmem [shape: f32[32,1], index: 4, kind: input, shape index: {}]
  %s5 = inlined_call_operand.vmem [shape: f32[16,32], index: 5, kind: input, shape index: {}]
  %s6 = inlined_call_operand.vmem [shape: f32[16,1], index: 6, kind: input, shape index: {}]
  %s7 = inlined_call_operand.vmem [shape: f32[8,16], index: 7, kind: input, shape index: {}]
  %s8 = inlined_call_operand.vmem [shape: f32[8,1], index: 8, kind: input, shape index: {}]
  %s9 = inlined_call_operand.vmem [shape: f32[8,8], index: 9, kind: input, shape index: {}]
  %s10 = inlined_call_operand.vmem [shape: f32[8,1], index: 10, kind: input, shape index: {}]
  %s11 = inlined_call_operand.vmem [shape: f32[1,16], index: 11, kind: input, shape index: {}]
  %s12 = inlined_call_operand.vmem [shape: f32[1,8], index: 12, kind: input, shape index: {}]
  %s13 = inlined_call_operand.<no memory space> [shape: f32[1,1], index: 13, kind: input, shape index: {}]
  %s14 = inlined_call_operand.hbm [shape: f32[1,256], index: 14, kind: output, shape index: {}]
  %s15 = sld [smem:[#allocation0]]
  $region165: #{tpu_custom_call.1} parent=0
    _
  %s17 = ssub.s32 1, %s15
  %s18 = scalar_select 0, %s17, %s15
  %v19 = vstv %s13
  %20 = vst [vmem:[#allocation2] sm:$0x1] %v19
  $region1: #{tpu_custom_call.1} parent=0
    #allocation3 [shape = 'u8[16384]{0}', space=vmem, size = 0x4000, scoped, tag = 'input window, operand 0']
    #allocation4 [shape = 'u8[16384]{0}', space=vmem, size = 0x4000, scoped, tag = 'input window, operand 1']
    #allocation5 [shape = 'u8[1024]{0}', space=vmem, size = 0x400, scoped, tag = 'output window, operand 0']
    #allocation6 [shape = 's32[2]{0}', space=sflag, size = 0x8, scoped, tag = 'scoped memory for tpu_custom_call.1']
    %21 = vsyncpa [#allocation6], 0
    %s22 = scalar_lea.sflag [#allocation6], 1
    %23 = vsyncpa %s22, 0
    loop: start=0, step=1, limit=4
    $region2: #{tpu_custom_call.1} parent=1 // loop_pre_header
      _
    $region3: #{tpu_custom_call.1} parent=1 // loop_header
      %s25 = sphi 0, %s29
      %p26 = scmp.ge.s32.totalorder %s25, 4
      %s35 = sphi 0, %s37
      %s38 = sphi 0, %s35
      %s39 = sphi 0, %s38
      %s55 = sphi 0, %s39
      %s61 = sphi 0, %s63
      %s64 = sphi 0, %s61
      %s65 = sphi 0, %s64
      %s81 = sphi 0, %s65
      %s85 = sphi 0, %s85
      %s87 = sphi 0, %s85
      %s88 = sphi 0, %s87
      %s102 = sphi 0, %s88
      %s106 = sphi 0, %s106
      %s108 = sphi 0, %s106
      %s109 = sphi 0, %s108
      %s123 = sphi 0, %s109
      %s127 = sphi 0, %s127
      %s129 = sphi 0, %s127
      %s130 = sphi 0, %s129
      %s144 = sphi 0, %s130
      %s148 = sphi 0, %s148
      %s150 = sphi 0, %s148
      %s151 = sphi 0, %s150
      %s165 = sphi 0, %s151
      %s169 = sphi 0, %s169
      %s171 = sphi 0, %s169
      %s172 = sphi 0, %s171
      %s186 = sphi 0, %s172
      %s190 = sphi 0, %s190
      %s192 = sphi 0, %s190
      %s193 = sphi 0, %s192
      %s207 = sphi 0, %s193
      %s211 = sphi 0, %s211
      %s213 = sphi 0, %s211
      %s214 = sphi 0, %s213
      %s228 = sphi 0, %s214
      %s232 = sphi 0, %s232
      %s234 = sphi 0, %s232
      %s235 = sphi 0, %s234
      %s249 = sphi 0, %s235
      %s253 = sphi 0, %s253
      %s255 = sphi 0, %s253
      %s256 = sphi 0, %s255
      %s270 = sphi 0, %s256
      %s274 = sphi 0, %s274
      %s276 = sphi 0, %s274
      %s277 = sphi 0, %s276
      %s291 = sphi 0, %s277
      %s295 = sphi 0, %s295
      %s297 = sphi 0, %s295
      %s298 = sphi 0, %s297
      %s312 = sphi 0, %s298
      %s316 = sphi 0, %s316
      %s318 = sphi 0, %s316
      %s319 = sphi 0, %s318
      %s333 = sphi 0, %s319
      %s339 = sphi 0, %s341
      %s342 = sphi 0, %s339
      %s343 = sphi 0, %s342
      %s359 = sphi 0, %s343
    $region4: #{tpu_custom_call.1} parent=1 // loop_header_branch
      %28 = sbr.rel (%p26) target = $region8
    $region5: #{tpu_custom_call.1} parent=1 // loop_body
      %s30 = ssub.s32 %s25, 1
      %s31 = ssub.s32 %s25, 2
      %s32 = sadd.s32 %s25, 1
      %s33 = ssub.s32 %s25, %s32
      %p34 = scmp.eq.s32.totalorder %s33, 0
      %s36 = sadd.s32 %s35, 1
      %s37 = scalar_select %p34, %s35, %s36
      %p40 = pneg %p34
      %p41 = scmp.eq.s32.totalorder %s25, 1
      %p42 = por %p40, %p41
      %p43 = scmp.ne.s32.totalorder %s35, %s38
      %p44 = scmp.eq.s32.totalorder %s25, 0
      %p45 = por %p43, %p44
      %p46 = scmp.ne.s32.totalorder %s35, %s38
      %p47 = scmp.eq.s32.totalorder %s30, 1
      %p48 = por %p46, %p47
      %p49 = scmp.ne.s32.totalorder %s38, %s39
      %p50 = scmp.eq.s32.totalorder %s30, 0
      %p51 = por %p49, %p50
      %p52 = scmp.ne.s32.totalorder %s38, %s39
      %p53 = scmp.eq.s32.totalorder %s31, 1
      %p54 = por %p52, %p53
      %p56 = scmp.ne.s32.totalorder %s39, %s55
      %p57 = scmp.eq.s32.totalorder %s31, 0
      %p58 = por %p56, %p57
      %s59 = ssub.s32 %s25, %s32
      %p60 = scmp.eq.s32.totalorder %s59, 0
      %s62 = sadd.s32 %s61, 1
      %s63 = scalar_select %p60, %s61, %s62
      %p66 = pneg %p60
      %p67 = scmp.eq.s32.totalorder %s25, 1
      %p68 = por %p66, %p67
      %p69 = scmp.ne.s32.totalorder %s61, %s64
      %p70 = scmp.eq.s32.totalorder %s25, 0
      %p71 = por %p69, %p70
      %p72 = scmp.ne.s32.totalorder %s61, %s64
      %p73 = scmp.eq.s32.totalorder %s30, 1
      %p74 = por %p72, %p73
      %p75 = scmp.ne.s32.totalorder %s64, %s65
      %p76 = scmp.eq.s32.totalorder %s30, 0
      %p77 = por %p75, %p76
      %p78 = scmp.ne.s32.totalorder %s64, %s65
      %p79 = scmp.eq.s32.totalorder %s31, 1
      %p80 = por %p78, %p79
      %p82 = scmp.ne.s32.totalorder %s65, %s81
      %p83 = scmp.eq.s32.totalorder %s31, 0
      %p84 = por %p82, %p83
      %s86 = sadd.s32 %s85, 1
      %p89 = scmp.eq.s32.totalorder %s25, 1
      %p90 = scmp.ne.s32.totalorder %s85, %s87
      %p91 = scmp.eq.s32.totalorder %s25, 0
      %p92 = por %p90, %p91
      %p93 = scmp.ne.s32.totalorder %s85, %s87
      %p94 = scmp.eq.s32.totalorder %s30, 1
      %p95 = por %p93, %p94
      %p96 = scmp.ne.s32.totalorder %s87, %s88
      %p97 = scmp.eq.s32.totalorder %s30, 0
      %p98 = por %p96, %p97
      %p99 = scmp.ne.s32.totalorder %s87, %s88
      %p100 = scmp.eq.s32.totalorder %s31, 1
      %p101 = por %p99, %p100
      %p103 = scmp.ne.s32.totalorder %s88, %s102
      %p104 = scmp.eq.s32.totalorder %s31, 0
      %p105 = por %p103, %p104
      %s107 = sadd.s32 %s106, 1
      %p110 = scmp.eq.s32.totalorder %s25, 1
      %p111 = scmp.ne.s32.totalorder %s106, %s108
      %p112 = scmp.eq.s32.totalorder %s25, 0
      %p113 = por %p111, %p112
      %p114 = scmp.ne.s32.totalorder %s106, %s108
      %p115 = scmp.eq.s32.totalorder %s30, 1
      %p116 = por %p114, %p115
      %p117 = scmp.ne.s32.totalorder %s108, %s109
      %p118 = scmp.eq.s32.totalorder %s30, 0
      %p119 = por %p117, %p118
      %p120 = scmp.ne.s32.totalorder %s108, %s109
      %p121 = scmp.eq.s32.totalorder %s31, 1
      %p122 = por %p120, %p121
      %p124 = scmp.ne.s32.totalorder %s109, %s123
      %p125 = scmp.eq.s32.totalorder %s31, 0
      %p126 = por %p124, %p125
      %s128 = sadd.s32 %s127, 1
      %p131 = scmp.eq.s32.totalorder %s25, 1
      %p132 = scmp.ne.s32.totalorder %s127, %s129
      %p133 = scmp.eq.s32.totalorder %s25, 0
      %p134 = por %p132, %p133
      %p135 = scmp.ne.s32.totalorder %s127, %s129
      %p136 = scmp.eq.s32.totalorder %s30, 1
      %p137 = por %p135, %p136
      %p138 = scmp.ne.s32.totalorder %s129, %s130
      %p139 = scmp.eq.s32.totalorder %s30, 0
      %p140 = por %p138, %p139
      %p141 = scmp.ne.s32.totalorder %s129, %s130
      %p142 = scmp.eq.s32.totalorder %s31, 1
      %p143 = por %p141, %p142
      %p145 = scmp.ne.s32.totalorder %s130, %s144
      %p146 = scmp.eq.s32.totalorder %s31, 0
      %p147 = por %p145, %p146
      %s149 = sadd.s32 %s148, 1
      %p152 = scmp.eq.s32.totalorder %s25, 1
      %p153 = scmp.ne.s32.totalorder %s148, %s150
      %p154 = scmp.eq.s32.totalorder %s25, 0
      %p155 = por %p153, %p154
      %p156 = scmp.ne.s32.totalorder %s148, %s150
      %p157 = scmp.eq.s32.totalorder %s30, 1
      %p158 = por %p156, %p157
      %p159 = scmp.ne.s32.totalorder %s150, %s151
      %p160 = scmp.eq.s32.totalorder %s30, 0
      %p161 = por %p159, %p160
      %p162 = scmp.ne.s32.totalorder %s150, %s151
      %p163 = scmp.eq.s32.totalorder %s31, 1
      %p164 = por %p162, %p163
      %p166 = scmp.ne.s32.totalorder %s151, %s165
      %p167 = scmp.eq.s32.totalorder %s31, 0
      %p168 = por %p166, %p167
      %s170 = sadd.s32 %s169, 1
      %p173 = scmp.eq.s32.totalorder %s25, 1
      %p174 = scmp.ne.s32.totalorder %s169, %s171
      %p175 = scmp.eq.s32.totalorder %s25, 0
      %p176 = por %p174, %p175
      %p177 = scmp.ne.s32.totalorder %s169, %s171
      %p178 = scmp.eq.s32.totalorder %s30, 1
      %p179 = por %p177, %p178
      %p180 = scmp.ne.s32.totalorder %s171, %s172
      %p181 = scmp.eq.s32.totalorder %s30, 0
      %p182 = por %p180, %p181
      %p183 = scmp.ne.s32.totalorder %s171, %s172
      %p184 = scmp.eq.s32.totalorder %s31, 1
      %p185 = por %p183, %p184
      %p187 = scmp.ne.s32.totalorder %s172, %s186
      %p188 = scmp.eq.s32.totalorder %s31, 0
      %p189 = por %p187, %p188
      %s191 = sadd.s32 %s190, 1
      %p194 = scmp.eq.s32.totalorder %s25, 1
      %p195 = scmp.ne.s32.totalorder %s190, %s192
      %p196 = scmp.eq.s32.totalorder %s25, 0
      %p197 = por %p195, %p196
      %p198 = scmp.ne.s32.totalorder %s190, %s192
      %p199 = scmp.eq.s32.totalorder %s30, 1
      %p200 = por %p198, %p199
      %p201 = scmp.ne.s32.totalorder %s192, %s193
      %p202 = scmp.eq.s32.totalorder %s30, 0
      %p203 = por %p201, %p202
      %p204 = scmp.ne.s32.totalorder %s192, %s193
      %p205 = scmp.eq.s32.totalorder %s31, 1
      %p206 = por %p204, %p205
      %p208 = scmp.ne.s32.totalorder %s193, %s207
      %p209 = scmp.eq.s32.totalorder %s31, 0
      %p210 = por %p208, %p209
      %s212 = sadd.s32 %s211, 1
      %p215 = scmp.eq.s32.totalorder %s25, 1
      %p216 = scmp.ne.s32.totalorder %s211, %s213
      %p217 = scmp.eq.s32.totalorder %s25, 0
      %p218 = por %p216, %p217
      %p219 = scmp.ne.s32.totalorder %s211, %s213
      %p220 = scmp.eq.s32.totalorder %s30, 1
      %p221 = por %p219, %p220
      %p222 = scmp.ne.s32.totalorder %s213, %s214
      %p223 = scmp.eq.s32.totalorder %s30, 0
      %p224 = por %p222, %p223
      %p225 = scmp.ne.s32.totalorder %s213, %s214
      %p226 = scmp.eq.s32.totalorder %s31, 1
      %p227 = por %p225, %p226
      %p229 = scmp.ne.s32.totalorder %s214, %s228
      %p230 = scmp.eq.s32.totalorder %s31, 0
      %p231 = por %p229, %p230
      %s233 = sadd.s32 %s232, 1
      %p236 = scmp.eq.s32.totalorder %s25, 1
      %p237 = scmp.ne.s32.totalorder %s232, %s234
      %p238 = scmp.eq.s32.totalorder %s25, 0
      %p239 = por %p237, %p238
      %p240 = scmp.ne.s32.totalorder %s232, %s234
      %p241 = scmp.eq.s32.totalorder %s30, 1
      %p242 = por %p240, %p241
      %p243 = scmp.ne.s32.totalorder %s234, %s235
      %p244 = scmp.eq.s32.totalorder %s30, 0
      %p245 = por %p243, %p244
      %p246 = scmp.ne.s32.totalorder %s234, %s235
      %p247 = scmp.eq.s32.totalorder %s31, 1
      %p248 = por %p246, %p247
      %p250 = scmp.ne.s32.totalorder %s235, %s249
      %p251 = scmp.eq.s32.totalorder %s31, 0
      %p252 = por %p250, %p251
      %s254 = sadd.s32 %s253, 1
      %p257 = scmp.eq.s32.totalorder %s25, 1
      %p258 = scmp.ne.s32.totalorder %s253, %s255
      %p259 = scmp.eq.s32.totalorder %s25, 0
      %p260 = por %p258, %p259
      %p261 = scmp.ne.s32.totalorder %s253, %s255
      %p262 = scmp.eq.s32.totalorder %s30, 1
      %p263 = por %p261, %p262
      %p264 = scmp.ne.s32.totalorder %s255, %s256
      %p265 = scmp.eq.s32.totalorder %s30, 0
      %p266 = por %p264, %p265
      %p267 = scmp.ne.s32.totalorder %s255, %s256
      %p268 = scmp.eq.s32.totalorder %s31, 1
      %p269 = por %p267, %p268
      %p271 = scmp.ne.s32.totalorder %s256, %s270
      %p272 = scmp.eq.s32.totalorder %s31, 0
      %p273 = por %p271, %p272
      %s275 = sadd.s32 %s274, 1
      %p278 = scmp.eq.s32.totalorder %s25, 1
      %p279 = scmp.ne.s32.totalorder %s274, %s276
      %p280 = scmp.eq.s32.totalorder %s25, 0
      %p281 = por %p279, %p280
      %p282 = scmp.ne.s32.totalorder %s274, %s276
      %p283 = scmp.eq.s32.totalorder %s30, 1
      %p284 = por %p282, %p283
      %p285 = scmp.ne.s32.totalorder %s276, %s277
      %p286 = scmp.eq.s32.totalorder %s30, 0
      %p287 = por %p285, %p286
      %p288 = scmp.ne.s32.totalorder %s276, %s277
      %p289 = scmp.eq.s32.totalorder %s31, 1
      %p290 = por %p288, %p289
      %p292 = scmp.ne.s32.totalorder %s277, %s291
      %p293 = scmp.eq.s32.totalorder %s31, 0
      %p294 = por %p292, %p293
      %s296 = sadd.s32 %s295, 1
      %p299 = scmp.eq.s32.totalorder %s25, 1
      %p300 = scmp.ne.s32.totalorder %s295, %s297
      %p301 = scmp.eq.s32.totalorder %s25, 0
      %p302 = por %p300, %p301
      %p303 = scmp.ne.s32.totalorder %s295, %s297
      %p304 = scmp.eq.s32.totalorder %s30, 1
      %p305 = por %p303, %p304
      %p306 = scmp.ne.s32.totalorder %s297, %s298
      %p307 = scmp.eq.s32.totalorder %s30, 0
      %p308 = por %p306, %p307
      %p309 = scmp.ne.s32.totalorder %s297, %s298
      %p310 = scmp.eq.s32.totalorder %s31, 1
      %p311 = por %p309, %p310
      %p313 = scmp.ne.s32.totalorder %s298, %s312
      %p314 = scmp.eq.s32.totalorder %s31, 0
      %p315 = por %p313, %p314
      %s317 = sadd.s32 %s316, 1
      %p320 = scmp.eq.s32.totalorder %s25, 1
      %p321 = scmp.ne.s32.totalorder %s316, %s318
      %p322 = scmp.eq.s32.totalorder %s25, 0
      %p323 = por %p321, %p322
      %p324 = scmp.ne.s32.totalorder %s316, %s318
      %p325 = scmp.eq.s32.totalorder %s30, 1
      %p326 = por %p324, %p325
      %p327 = scmp.ne.s32.totalorder %s318, %s319
      %p328 = scmp.eq.s32.totalorder %s30, 0
      %p329 = por %p327, %p328
      %p330 = scmp.ne.s32.totalorder %s318, %s319
      %p331 = scmp.eq.s32.totalorder %s31, 1
      %p332 = por %p330, %p331
      %p334 = scmp.ne.s32.totalorder %s319, %s333
      %p335 = scmp.eq.s32.totalorder %s31, 0
      %p336 = por %p334, %p335
      %s337 = ssub.s32 %s25, %s32
      %p338 = scmp.eq.s32.totalorder %s337, 0
      %s340 = sadd.s32 %s339, 1
      %s341 = scalar_select %p338, %s339, %s340
      %p344 = pneg %p338
      %p345 = scmp.eq.s32.totalorder %s25, 1
      %p346 = por %p344, %p345
      %p347 = scmp.ne.s32.totalorder %s339, %s342
      %p348 = scmp.eq.s32.totalorder %s25, 0
      %p349 = por %p347, %p348
      %p350 = scmp.ne.s32.totalorder %s339, %s342
      %p351 = scmp.eq.s32.totalorder %s30, 1
      %p352 = por %p350, %p351
      %p353 = scmp.ne.s32.totalorder %s342, %s343
      %p354 = scmp.eq.s32.totalorder %s30, 0
      %p355 = por %p353, %p354
      %p356 = scmp.ne.s32.totalorder %s342, %s343
      %p357 = scmp.eq.s32.totalorder %s31, 1
      %p358 = por %p356, %p357
      %p360 = scmp.ne.s32.totalorder %s343, %s359
      %p361 = scmp.eq.s32.totalorder %s31, 0
      %p362 = por %p360, %p361
      %p363 = scmp.le.s32.totalorder 1, %s25
      %p364 = scmp.lt.s32.totalorder %s25, 3
      %p365 = pnand %p363, %p364
      %p366 = pneg %p365
      // Predicated region
      $region9: #{tpu_custom_call.1} parent=5 // pred_check
        _
      $region10: #{tpu_custom_call.1} parent=5 // pred_check_branch
        %368 = sbr.rel (%p365) target = $region12
      $region11: #{tpu_custom_call.1} parent=5 // pred_region
        %s369 = ssub.s32 %s25, 1
        // Predicated region
        $region13: #{tpu_custom_call.1} parent=11 // pred_check
          %p370 = pneg %p98
        $region14: #{tpu_custom_call.1} parent=11 // pred_check_branch
          %372 = sbr.rel (%p370) target = $region16
        $region15: #{tpu_custom_call.1} parent=11 // pred_region
          _
        $region16: #{tpu_custom_call.1} parent=11 // pred_fallthru
          _
        // Predicated region
        $region17: #{tpu_custom_call.1} parent=11 // pred_check
          %p373 = pneg %p119
        $region18: #{tpu_custom_call.1} parent=11 // pred_check_branch
          %375 = sbr.rel (%p373) target = $region20
        $region19: #{tpu_custom_call.1} parent=11 // pred_region
          _
        $region20: #{tpu_custom_call.1} parent=11 // pred_fallthru
          _
        // Predicated region
        $region21: #{tpu_custom_call.1} parent=11 // pred_check
          %p376 = pneg %p140
        $region22: #{tpu_custom_call.1} parent=11 // pred_check_branch
          %378 = sbr.rel (%p376) target = $region24
        $region23: #{tpu_custom_call.1} parent=11 // pred_region
          _
        $region24: #{tpu_custom_call.1} parent=11 // pred_fallthru
          _
        // Predicated region
        $region25: #{tpu_custom_call.1} parent=11 // pred_check
          %p379 = pneg %p161
        $region26: #{tpu_custom_call.1} parent=11 // pred_check_branch
          %381 = sbr.rel (%p379) target = $region28
        $region27: #{tpu_custom_call.1} parent=11 // pred_region
          _
        $region28: #{tpu_custom_call.1} parent=11 // pred_fallthru
          _
        // Predicated region
        $region29: #{tpu_custom_call.1} parent=11 // pred_check
          %p382 = pneg %p182
        $region30: #{tpu_custom_call.1} parent=11 // pred_check_branch
          %384 = sbr.rel (%p382) target = $region32
        $region31: #{tpu_custom_call.1} parent=11 // pred_region
          _
        $region32: #{tpu_custom_call.1} parent=11 // pred_fallthru
          _
        // Predicated region
        $region33: #{tpu_custom_call.1} parent=11 // pred_check
          %p385 = pneg %p203
        $region34: #{tpu_custom_call.1} parent=11 // pred_check_branch
          %387 = sbr.rel (%p385) target = $region36
        $region35: #{tpu_custom_call.1} parent=11 // pred_region
          _
        $region36: #{tpu_custom_call.1} parent=11 // pred_fallthru
          _
        // Predicated region
        $region37: #{tpu_custom_call.1} parent=11 // pred_check
          %p388 = pneg %p224
        $region38: #{tpu_custom_call.1} parent=11 // pred_check_branch
          %390 = sbr.rel (%p388) target = $region40
        $region39: #{tpu_custom_call.1} parent=11 // pred_region
          _
        $region40: #{tpu_custom_call.1} parent=11 // pred_fallthru
          _
        // Predicated region
        $region41: #{tpu_custom_call.1} parent=11 // pred_check
          %p391 = pneg %p245
        $region42: #{tpu_custom_call.1} parent=11 // pred_check_branch
          %393 = sbr.rel (%p391) target = $region44
        $region43: #{tpu_custom_call.1} parent=11 // pred_region
          _
        $region44: #{tpu_custom_call.1} parent=11 // pred_fallthru
          _
        // Predicated region
        $region45: #{tpu_custom_call.1} parent=11 // pred_check
          %p394 = pneg %p266
        $region46: #{tpu_custom_call.1} parent=11 // pred_check_branch
          %396 = sbr.rel (%p394) target = $region48
        $region47: #{tpu_custom_call.1} parent=11 // pred_region
          _
        $region48: #{tpu_custom_call.1} parent=11 // pred_fallthru
          _
        // Predicated region
        $region49: #{tpu_custom_call.1} parent=11 // pred_check
          %p397 = pneg %p287
        $region50: #{tpu_custom_call.1} parent=11 // pred_check_branch
          %399 = sbr.rel (%p397) target = $region52
        $region51: #{tpu_custom_call.1} parent=11 // pred_region
          _
        $region52: #{tpu_custom_call.1} parent=11 // pred_fallthru
          _
        // Predicated region
        $region53: #{tpu_custom_call.1} parent=11 // pred_check
          %p400 = pneg %p308
        $region54: #{tpu_custom_call.1} parent=11 // pred_check_branch
          %402 = sbr.rel (%p400) target = $region56
        $region55: #{tpu_custom_call.1} parent=11 // pred_region
          _
        $region56: #{tpu_custom_call.1} parent=11 // pred_fallthru
          _
        // Predicated region
        $region57: #{tpu_custom_call.1} parent=11 // pred_check
          %p403 = pneg %p329
        $region58: #{tpu_custom_call.1} parent=11 // pred_check_branch
          %405 = sbr.rel (%p403) target = $region60
        $region59: #{tpu_custom_call.1} parent=11 // pred_region
          _
        $region60: #{tpu_custom_call.1} parent=11 // pred_fallthru
          _
      $region12: #{tpu_custom_call.1} parent=5 // pred_fallthru
        _
      %p406 = scmp.lt.s32.totalorder %s25, 2
      // Predicated region
      $region61: #{tpu_custom_call.1} parent=5 // pred_check
        %p407 = pneg %p406
      $region62: #{tpu_custom_call.1} parent=5 // pred_check_branch
        %409 = sbr.rel (%p407) target = $region64
      $region63: #{tpu_custom_call.1} parent=5 // pred_region
        // Predicated region
        $region65: #{tpu_custom_call.1} parent=63 // pred_check
          %p410 = pneg %p45
        $region66: #{tpu_custom_call.1} parent=63 // pred_check_branch
          %412 = sbr.rel (%p410) target = $region68
        $region67: #{tpu_custom_call.1} parent=63 // pred_region
          %s413 = sand.u32 %s35, 1
          %s414 = sand.u32 %s35, 1
          %s415 = smul.addr %s414, 16
          %s416 = scalar_lea.vmem [#allocation3], %s415
          %s417 = smul.addr %s25, 8
          %s418 = scalar_lea.vmem %s0, %s417
          // Predicated region
          $region69: #{tpu_custom_call.1} parent=67 // pred_check
            _
          $region70: #{tpu_custom_call.1} parent=67 // pred_check_branch
            %420 = sbr.rel (0) target = $region72
          $region71: #{tpu_custom_call.1} parent=67 // pred_region
            // Predicated region
            $region73: #{tpu_custom_call.1} parent=71 // pred_check
              _
            $region74: #{tpu_custom_call.1} parent=71 // pred_check_branch
              %422 = sbr.rel (0) target = $region76
            $region75: #{tpu_custom_call.1} parent=71 // pred_region
              // Predicated region
              $region88: #{tpu_custom_call.1} parent=75 // pred_check
                _
              $region89: #{tpu_custom_call.1} parent=75 // pred_check_branch
                %440 = sbr.rel (0) target = $region91
              $region90: #{tpu_custom_call.1} parent=75 // pred_region
                loop: start=0, step=1, limit=1
                $region92: #{tpu_custom_call.1} parent=90 // loop_pre_header
                  _
                $region93: #{tpu_custom_call.1} parent=90 // loop_header
                  %s442 = sphi 0, %s446
                  %p443 = scmp.ge.s32.totalorder %s442, 1
                  %s447 = sphi %s418, %s418
                  %s448 = sphi %s416, %s416
                $region94: #{tpu_custom_call.1} parent=90 // loop_header_branch
                  %445 = sbr.rel (%p443) target = $region98
                $region95: #{tpu_custom_call.1} parent=90 // loop_body
                  %v449 = vld [vmem:[%s447] sm:$0xff]
                  %450 = vst [vmem:[%s448] sm:$0xff] %v449
                  %v451 = vld [vmem:[%s447 + $0x10] sm:$0xff]
                  %452 = vst [vmem:[%s448 + $0x8] sm:$0xff] %v451
                $region96: #{tpu_custom_call.1} parent=90 // loop_footer
                  %s446 = sadd.s32 1, %s442
                $region97: #{tpu_custom_call.1} parent=90 // loop_footer_branch
                  %441 = sbr.rel target = $region93
                $region98: #{tpu_custom_call.1} parent=90 // loop_exit
                  _
              $region91: #{tpu_custom_call.1} parent=75 // pred_fallthru
                _
              // Predicated region
              $region99: #{tpu_custom_call.1} parent=75 // pred_check
                _
              $region100: #{tpu_custom_call.1} parent=75 // pred_check_branch
                %454 = sbr.rel target = $region102
              $region101: #{tpu_custom_call.1} parent=75 // pred_region
                _
              $region102: #{tpu_custom_call.1} parent=75 // pred_fallthru
                _
            $region76: #{tpu_custom_call.1} parent=71 // pred_fallthru
              _
            // Predicated region
            $region77: #{tpu_custom_call.1} parent=71 // pred_check
              _
            $region78: #{tpu_custom_call.1} parent=71 // pred_check_branch
              %424 = sbr.rel target = $region80
            $region79: #{tpu_custom_call.1} parent=71 // pred_region
              %s426 = ssub.s32 256, 1
              loop: start=0, step=1, limit=1
              $region81: #{tpu_custom_call.1} parent=79 // loop_pre_header
                _
              $region82: #{tpu_custom_call.1} parent=79 // loop_header
                %s428 = sphi 0, %s432
                %p429 = scmp.ge.s32.totalorder %s428, 1
                %s433 = sphi %s418, %s418
                %s434 = sphi %s416, %s416
              $region83: #{tpu_custom_call.1} parent=79 // loop_header_branch
                %431 = sbr.rel (%p429) target = $region87
              $region84: #{tpu_custom_call.1} parent=79 // loop_body
                %v435 = vld [vmem:[%s433] sm:%s426]
                %436 = vst [vmem:[%s434] sm:%s426] %v435
                %v437 = vld [vmem:[%s433 + $0x10] sm:%s426]
                %438 = vst [vmem:[%s434 + $0x8] sm:%s426] %v437
              $region85: #{tpu_custom_call.1} parent=79 // loop_footer
                %s432 = sadd.s32 1, %s428
              $region86: #{tpu_custom_call.1} parent=79 // loop_footer_branch
                %427 = sbr.rel target = $region82
              $region87: #{tpu_custom_call.1} parent=79 // loop_exit
                _
            $region80: #{tpu_custom_call.1} parent=71 // pred_fallthru
              _
          $region72: #{tpu_custom_call.1} parent=67 // pred_fallthru
            _
          %455 = vnop
        $region68: #{tpu_custom_call.1} parent=63 // pred_fallthru
          _
        // Predicated region
        $region103: #{tpu_custom_call.1} parent=63 // pred_check
          %p456 = pneg %p71
        $region104: #{tpu_custom_call.1} parent=63 // pred_check_branch
          %458 = sbr.rel (%p456) target = $region106
        $region105: #{tpu_custom_call.1} parent=63 // pred_region
          %s459 = sand.u32 %s61, 1
          %s460 = sand.u32 %s61, 1
          %s461 = smul.addr %s460, 16
          %s462 = scalar_lea.vmem [#allocation4], %s461
          %s463 = smul.addr %s25, 8
          %s464 = scalar_lea.vmem %s1, %s463
          // Predicated region
          $region107: #{tpu_custom_call.1} parent=105 // pred_check
            _
          $region108: #{tpu_custom_call.1} parent=105 // pred_check_branch
            %466 = sbr.rel (0) target = $region110
          $region109: #{tpu_custom_call.1} parent=105 // pred_region
            // Predicated region
            $region111: #{tpu_custom_call.1} parent=109 // pred_check
              _
            $region112: #{tpu_custom_call.1} parent=109 // pred_check_branch
              %468 = sbr.rel (0) target = $region114
            $region113: #{tpu_custom_call.1} parent=109 // pred_region
              // Predicated region
              $region126: #{tpu_custom_call.1} parent=113 // pred_check
                _
              $region127: #{tpu_custom_call.1} parent=113 // pred_check_branch
                %486 = sbr.rel (0) target = $region129
              $region128: #{tpu_custom_call.1} parent=113 // pred_region
                loop: start=0, step=1, limit=1
                $region130: #{tpu_custom_call.1} parent=128 // loop_pre_header
                  _
                $region131: #{tpu_custom_call.1} parent=128 // loop_header
                  %s488 = sphi 0, %s492
                  %p489 = scmp.ge.s32.totalorder %s488, 1
                  %s493 = sphi %s464, %s464
                  %s494 = sphi %s462, %s462
                $region132: #{tpu_custom_call.1} parent=128 // loop_header_branch
                  %491 = sbr.rel (%p489) target = $region136
                $region133: #{tpu_custom_call.1} parent=128 // loop_body
                  %v495 = vld [vmem:[%s493] sm:$0xff]
                  %496 = vst [vmem:[%s494] sm:$0xff] %v495
                  %v497 = vld [vmem:[%s493 + $0x10] sm:$0xff]
                  %498 = vst [vmem:[%s494 + $0x8] sm:$0xff] %v497
                $region134: #{tpu_custom_call.1} parent=128 // loop_footer
                  %s492 = sadd.s32 1, %s488
                $region135: #{tpu_custom_call.1} parent=128 // loop_footer_branch
                  %487 = sbr.rel target = $region131
                $region136: #{tpu_custom_call.1} parent=128 // loop_exit
                  _
              $region129: #{tpu_custom_call.1} parent=113 // pred_fallthru
                _
              // Predicated region
              $region137: #{tpu_custom_call.1} parent=113 // pred_check
                _
              $region138: #{tpu_custom_call.1} parent=113 // pred_check_branch
                %500 = sbr.rel target = $region140
              $region139: #{tpu_custom_call.1} parent=113 // pred_region
                _
              $region140: #{tpu_custom_call.1} parent=113 // pred_fallthru
                _
            $region114: #{tpu_custom_call.1} parent=109 // pred_fallthru
              _
            // Predicated region
            $region115: #{tpu_custom_call.1} parent=109 // pred_check
              _
            $region116: #{tpu_custom_call.1} parent=109 // pred_check_branch
              %470 = sbr.rel target = $region118
            $region117: #{tpu_custom_call.1} parent=109 // pred_region
              %s472 = ssub.s32 256, 1
              loop: start=0, step=1, limit=1
              $region119: #{tpu_custom_call.1} parent=117 // loop_pre_header
                _
              $region120: #{tpu_custom_call.1} parent=117 // loop_header
                %s474 = sphi 0, %s478
                %p475 = scmp.ge.s32.totalorder %s474, 1
                %s479 = sphi %s464, %s464
                %s480 = sphi %s462, %s462
              $region121: #{tpu_custom_call.1} parent=117 // loop_header_branch
                %477 = sbr.rel (%p475) target = $region125
              $region122: #{tpu_custom_call.1} parent=117 // loop_body
                %v481 = vld [vmem:[%s479] sm:%s472]
                %482 = vst [vmem:[%s480] sm:%s472] %v481
                %v483 = vld [vmem:[%s479 + $0x10] sm:%s472]
                %484 = vst [vmem:[%s480 + $0x8] sm:%s472] %v483
              $region123: #{tpu_custom_call.1} parent=117 // loop_footer
                %s478 = sadd.s32 1, %s474
              $region124: #{tpu_custom_call.1} parent=117 // loop_footer_branch
                %473 = sbr.rel target = $region120
              $region125: #{tpu_custom_call.1} parent=117 // loop_exit
                _
            $region118: #{tpu_custom_call.1} parent=109 // pred_fallthru
              _
          $region110: #{tpu_custom_call.1} parent=105 // pred_fallthru
            _
          %501 = vnop
        $region106: #{tpu_custom_call.1} parent=63 // pred_fallthru
          _
      $region64: #{tpu_custom_call.1} parent=5 // pred_fallthru
        _
      %p502 = scmp.le.s32.totalorder 1, %s25
      %p503 = scmp.lt.s32.totalorder %s25, 3
      %p504 = pnand %p502, %p503
      %p505 = pneg %p504
      // Predicated region
      $region141: #{tpu_custom_call.1} parent=5 // pred_check
        _
      $region142: #{tpu_custom_call.1} parent=5 // pred_check_branch
        %507 = sbr.rel (%p504) target = $region144
      $region143: #{tpu_custom_call.1} parent=5 // pred_region
        %s508 = ssub.s32 %s25, 1
        %s509 = sand.u32 %s38, 1
        %s510 = sand.u32 %s38, 1
        %s511 = smul.addr %s510, 16
        %s512 = scalar_lea.vmem [#allocation3], %s511
        // Predicated region
        $region145: #{tpu_custom_call.1} parent=143 // pred_check
          %p513 = pneg %p51
        $region146: #{tpu_custom_call.1} parent=143 // pred_check_branch
          %515 = sbr.rel (%p513) target = $region148
        $region147: #{tpu_custom_call.1} parent=143 // pred_region
          _
        $region148: #{tpu_custom_call.1} parent=143 // pred_fallthru
          _
        %s516 = sand.u32 %s64, 1
        %s517 = sand.u32 %s64, 1
        %s518 = smul.addr %s517, 16
        %s519 = scalar_lea.vmem [#allocation4], %s518
        // Predicated region
        $region149: #{tpu_custom_call.1} parent=143 // pred_check
          %p520 = pneg %p77
        $region150: #{tpu_custom_call.1} parent=143 // pred_check_branch
          %522 = sbr.rel (%p520) target = $region152
        $region151: #{tpu_custom_call.1} parent=143 // pred_region
          _
        $region152: #{tpu_custom_call.1} parent=143 // pred_fallthru
          _
        %s523 = sand.u32 %s38, 1
        %s524 = sand.u32 %s38, 1
        %s525 = smul.addr %s524, 16
        %s526 = scalar_lea.vmem [#allocation3], %s525
        %p527 = pneg %p51
        %p528 = pneg %p48
        %s529 = sand.u32 %s64, 1
        %s530 = sand.u32 %s64, 1
        %s531 = smul.addr %s530, 16
        %s532 = scalar_lea.vmem [#allocation4], %s531
        %p533 = pneg %p77
        %p534 = pneg %p74
        %p535 = pneg %p98
        %p536 = pneg %p95
        %p537 = pneg %p119
        %p538 = pneg %p116
        %p539 = pneg %p140
        %p540 = pneg %p137
        %p541 = pneg %p161
        %p542 = pneg %p158
        %p543 = pneg %p182
        %p544 = pneg %p179
        %p545 = pneg %p203
        %p546 = pneg %p200
        %p547 = pneg %p224
        %p548 = pneg %p221
        %p549 = pneg %p245
        %p550 = pneg %p242
        %p551 = pneg %p266
        %p552 = pneg %p263
        %p553 = pneg %p287
        %p554 = pneg %p284
        %p555 = pneg %p308
        %p556 = pneg %p305
        %p557 = pneg %p329
        %p558 = pneg %p326
        %p559 = pneg %p355
        %p560 = pneg %p352
        %s561 = sand.u32 %s342, 1
        %s562 = scalar_lea.sflag [#allocation6], %s561
        %s563 = sand.u32 %s342, 1
        %s564 = scalar_lea.vmem [#allocation5], %s563
        %v565 = vld [vmem:[%s512] sm:$0xff]
        %v566 = vld [vmem:[%s512 + $0x8] sm:$0xff]
        %v567 = vld [vmem:[%s519] sm:$0xff]
        %v568 = vld [vmem:[%s519 + $0x8] sm:$0xff]
        %v569 = vmul.f32 %v565, %v567
        %v570 = vmul.f32 %v566, %v568
        %v571 = vld [vmem:[%s2] sm:$0xff]
        %v572 = vld [vmem:[%s2 + $0x8] sm:$0xff]
        %v573 = vld [vmem:[%s2 + $0x10] sm:$0xff]
        %v574 = vld [vmem:[%s2 + $0x18] sm:$0xff]
        %v575 = vld [vmem:[%s3] sm:$0xff]
        %v576 = vld [vmem:[%s3 + $0x8] sm:$0xff]
        %v577 = vld [vmem:[%s3 + $0x10] sm:$0xff]
        %v578 = vld [vmem:[%s3 + $0x18] sm:$0xff]
        %vm579 = vcmask 130048
        %v581 = vsel %vm579, %v575, 0
        %v584 = vsel %vm579, %v576, 0
        %v587 = vsel %vm579, %v577, 0
        %v590 = vsel %vm579, %v578, 0
        %592 = vmatpush.msra.mxu0 0.0
        %593 = vmatpush.msra.mxu0 0.0
        %594 = vmatpush.msra.mxu0 0.0
        %595 = vmatpush.msra.mxu0 0.0
        %596 = vmatpush.msra.mxu0 0.0
        %597 = vmatpush.msra.mxu0 0.0
        %598 = vmatpush.msra.mxu0 0.0
        %599 = vmatpush.msra.mxu0 0.0
        %600 = vmatpush.msra.mxu0 0.0
        %601 = vmatpush.msra.mxu0 0.0
        %602 = vmatpush.msra.mxu0 0.0
        %603 = vmatpush.msra.mxu0 0.0
        %604 = vmatpush.msra.mxu0 0.0
        %605 = vmatpush.msra.mxu0 0.0
        %606 = vmatpush.msra.mxu0 %v568
        %607 = vmatpush.msra.mxu0 %v567
        %608 = vmatmul.f32.gmra.mxu0 %v581
        %v609 = vpop.f32.mrf.mxu0
        %v610 = vadd.f32 0.0, %v609
        %611 = vmatmul.f32.gmra.mxu0 %v584
        %v612 = vpop.f32.mrf.mxu0
        %v613 = vadd.f32 0.0, %v612
        %614 = vmatmul.f32.gmra.mxu0 %v587
        %v615 = vpop.f32.mrf.mxu0
        %v616 = vadd.f32 0.0, %v615
        %617 = vmatmul.f32.gmra.mxu0 %v590
        %v618 = vpop.f32.mrf.mxu0
        %v619 = vadd.f32 0.0, %v618
        %620 = vdwg.mxu0
        %v622 = vsel %vm579, %v571, 0
        %v625 = vsel %vm579, %v572, 0
        %v628 = vsel %vm579, %v573, 0
        %v631 = vsel %vm579, %v574, 0
        %633 = vmatpush.msra.mxu0 0.0
        %634 = vmatpush.msra.mxu0 0.0
        %635 = vmatpush.msra.mxu0 0.0
        %636 = vmatpush.msra.mxu0 0.0
        %637 = vmatpush.msra.mxu0 0.0
        %638 = vmatpush.msra.mxu0 0.0
        %639 = vmatpush.msra.mxu0 0.0
        %640 = vmatpush.msra.mxu0 0.0
        %641 = vmatpush.msra.mxu0 0.0
        %642 = vmatpush.msra.mxu0 0.0
        %643 = vmatpush.msra.mxu0 0.0
        %644 = vmatpush.msra.mxu0 0.0
        %645 = vmatpush.msra.mxu0 0.0
        %646 = vmatpush.msra.mxu0 0.0
        %647 = vmatpush.msra.mxu0 %v566
        %648 = vmatpush.msra.mxu0 %v565
        %649 = vmatmul.f32.gmra.mxu0 %v622
        %v650 = vpop.f32.mrf.mxu0
        %v651 = vadd.f32 %v610, %v650
        %652 = vmatmul.f32.gmra.mxu0 %v625
        %v653 = vpop.f32.mrf.mxu0
        %v654 = vadd.f32 %v613, %v653
        %655 = vmatmul.f32.gmra.mxu0 %v628
        %v656 = vpop.f32.mrf.mxu0
        %v657 = vadd.f32 %v616, %v656
        %658 = vmatmul.f32.gmra.mxu0 %v631
        %v659 = vpop.f32.mrf.mxu0
        %v660 = vadd.f32 %v619, %v659
        %661 = vdwg.mxu0
        %v662 = vld [vmem:[%s4] sm:$0xff]
        %v663 = vld [vmem:[%s4 + $0x8] sm:$0xff]
        %v664 = vld [vmem:[%s4 + $0x10] sm:$0xff]
        %v665 = vld [vmem:[%s4 + $0x18] sm:$0xff]
        %667 = vset.pattern.permute.xlu0 0
        %668 = vperm.xlu0 %667, %v662
        %v669 = vpop.permute.xlu0 %668
        %672 = vset.pattern.permute.xlu0 0
        %673 = vperm.xlu0 %672, %v663
        %v674 = vpop.permute.xlu0 %673
        %677 = vset.pattern.permute.xlu0 0
        %678 = vperm.xlu0 %677, %v664
        %v679 = vpop.permute.xlu0 %678
        %682 = vset.pattern.permute.xlu0 0
        %683 = vperm.xlu0 %682, %v665
        %v684 = vpop.permute.xlu0 %683
        %v686 = vadd.f32 %v651, %v669
        %v687 = vadd.f32 %v654, %v674
        %v688 = vadd.f32 %v657, %v679
        %v689 = vadd.f32 %v660, %v684
        %v690 = vmax.f32 %v686, 0.0
        %v691 = vmax.f32 %v687, 0.0
        %v692 = vmax.f32 %v688, 0.0
        %v693 = vmax.f32 %v689, 0.0
        %v694 = vld [vmem:[%s5] sm:$0xff]
        %v695 = vld [vmem:[%s5 + $0x8] sm:$0xff]
        %v696 = vld [vmem:[%s6] sm:$0xff]
        %v697 = vld [vmem:[%s6 + $0x8] sm:$0xff]
        %699 = vset.pattern.permute.xlu0 0
        %700 = vperm.xlu0 %699, %v696
        %v701 = vpop.permute.xlu0 %700
        %704 = vset.pattern.permute.xlu0 0
        %705 = vperm.xlu0 %704, %v697
        %v706 = vpop.permute.xlu0 %705
        %vm708 = vcmask 261120
        %v710 = vsel %vm708, %v694, 0
        %v713 = vsel %vm708, %v695, 0
        %715 = vmatpush.msra.mxu0 0.0
        %716 = vmatpush.msra.mxu0 0.0
        %717 = vmatpush.msra.mxu0 0.0
        %718 = vmatpush.msra.mxu0 0.0
        %719 = vmatpush.msra.mxu0 0.0
        %720 = vmatpush.msra.mxu0 0.0
        %721 = vmatpush.msra.mxu0 0.0
        %722 = vmatpush.msra.mxu0 0.0
        %723 = vmatpush.msra.mxu0 0.0
        %724 = vmatpush.msra.mxu0 0.0
        %725 = vmatpush.msra.mxu0 0.0
        %726 = vmatpush.msra.mxu0 0.0
        %727 = vmatpush.msra.mxu0 %v693
        %728 = vmatpush.msra.mxu0 %v692
        %729 = vmatpush.msra.mxu0 %v691
        %730 = vmatpush.msra.mxu0 %v690
        %731 = vmatmul.f32.gmra.mxu0 %v710
        %v732 = vpop.f32.mrf.mxu0
        %v733 = vadd.f32 %v701, %v732
        %734 = vmatmul.f32.gmra.mxu0 %v713
        %v735 = vpop.f32.mrf.mxu0
        %v736 = vadd.f32 %v706, %v735
        %737 = vdwg.mxu0
        %v738 = vmax.f32 %v733, 0.0
        %v739 = vmax.f32 %v736, 0.0
        %v740 = vld [vmem:[%s7] sm:$0xff]
        %v741 = vld [vmem:[%s8] sm:$0xff]
        %743 = vset.pattern.permute.xlu0 0
        %744 = vperm.xlu0 %743, %v741
        %v745 = vpop.permute.xlu0 %744
        %v748 = vsel %vm579, %v740, 0
        %750 = vmatpush.msra.mxu0 0.0
        %751 = vmatpush.msra.mxu0 0.0
        %752 = vmatpush.msra.mxu0 0.0
        %753 = vmatpush.msra.mxu0 0.0
        %754 = vmatpush.msra.mxu0 0.0
        %755 = vmatpush.msra.mxu0 0.0
        %756 = vmatpush.msra.mxu0 0.0
        %757 = vmatpush.msra.mxu0 0.0
        %758 = vmatpush.msra.mxu0 0.0
        %759 = vmatpush.msra.mxu0 0.0
        %760 = vmatpush.msra.mxu0 0.0
        %761 = vmatpush.msra.mxu0 0.0
        %762 = vmatpush.msra.mxu0 0.0
        %763 = vmatpush.msra.mxu0 0.0
        %764 = vmatpush.msra.mxu0 %v739
        %765 = vmatpush.msra.mxu0 %v738
        %766 = vmatmul.f32.gmra.mxu0 %v748
        %v767 = vpop.f32.mrf.mxu0
        %v768 = vadd.f32 %v745, %v767
        %769 = vdwg.mxu0
        %v770 = vmax.f32 %v768, 0.0
        %v771 = vld [vmem:[%s9] sm:$0xff]
        %v772 = vld [vmem:[%s10] sm:$0xff]
        %774 = vset.pattern.permute.xlu0 0
        %775 = vperm.xlu0 %774, %v772
        %v776 = vpop.permute.xlu0 %775
        %vm778 = vcmask 64512
        %v780 = vsel %vm778, %v771, 0
        %782 = vmatpush.msra.mxu0 0.0
        %783 = vmatpush.msra.mxu0 0.0
        %784 = vmatpush.msra.mxu0 0.0
        %785 = vmatpush.msra.mxu0 0.0
        %786 = vmatpush.msra.mxu0 0.0
        %787 = vmatpush.msra.mxu0 0.0
        %788 = vmatpush.msra.mxu0 0.0
        %789 = vmatpush.msra.mxu0 0.0
        %790 = vmatpush.msra.mxu0 0.0
        %791 = vmatpush.msra.mxu0 0.0
        %792 = vmatpush.msra.mxu0 0.0
        %793 = vmatpush.msra.mxu0 0.0
        %794 = vmatpush.msra.mxu0 0.0
        %795 = vmatpush.msra.mxu0 0.0
        %796 = vmatpush.msra.mxu0 0.0
        %797 = vmatpush.msra.mxu0 %v770
        %798 = vmatmul.f32.gmra.mxu0 %v780
        %v799 = vpop.f32.mrf.mxu0
        %v800 = vadd.f32 %v776, %v799
        %801 = vdwg.mxu0
        %v802 = vmax.f32 %v800, 0.0
        %v803 = vld [vmem:[%s11] sm:$0x1]
        %v804 = vld [vmem:[%s12] sm:$0x1]
        %v806 = vsel %vm778, %v804, 0
        %808 = vmatpush.msra.mxu0 0.0
        %809 = vmatpush.msra.mxu0 0.0
        %810 = vmatpush.msra.mxu0 0.0
        %811 = vmatpush.msra.mxu0 0.0
        %812 = vmatpush.msra.mxu0 0.0
        %813 = vmatpush.msra.mxu0 0.0
        %814 = vmatpush.msra.mxu0 0.0
        %815 = vmatpush.msra.mxu0 0.0
        %816 = vmatpush.msra.mxu0 0.0
        %817 = vmatpush.msra.mxu0 0.0
        %818 = vmatpush.msra.mxu0 0.0
        %819 = vmatpush.msra.mxu0 0.0
        %820 = vmatpush.msra.mxu0 0.0
        %821 = vmatpush.msra.mxu0 0.0
        %822 = vmatpush.msra.mxu0 0.0
        %823 = vmatpush.msra.mxu0 %v802
        %824 = vmatmul.f32.gmra.mxu0 %v806
        %v825 = vpop.f32.mrf.mxu0
        %v826 = vadd.f32 0.0, %v825
        %827 = vdwg.mxu0
        %v829 = vsel %vm579, %v803, 0
        %831 = vmatpush.msra.mxu0 0.0
        %832 = vmatpush.msra.mxu0 0.0
        %833 = vmatpush.msra.mxu0 0.0
        %834 = vmatpush.msra.mxu0 0.0
        %835 = vmatpush.msra.mxu0 0.0
        %836 = vmatpush.msra.mxu0 0.0
        %837 = vmatpush.msra.mxu0 0.0
        %838 = vmatpush.msra.mxu0 0.0
        %839 = vmatpush.msra.mxu0 0.0
        %840 = vmatpush.msra.mxu0 0.0
        %841 = vmatpush.msra.mxu0 0.0
        %842 = vmatpush.msra.mxu0 0.0
        %843 = vmatpush.msra.mxu0 0.0
        %844 = vmatpush.msra.mxu0 0.0
        %845 = vmatpush.msra.mxu0 %v570
        %846 = vmatpush.msra.mxu0 %v569
        %847 = vmatmul.f32.gmra.mxu0 %v829
        %v848 = vpop.f32.mrf.mxu0
        %v849 = vadd.f32 %v826, %v848
        %850 = vdwg.mxu0
        %v851 = vld [vmem:[#allocation2] sm:$0x1]
        %853 = vset.pattern.permute.xlu0 0
        %854 = vperm.xlu0 %853, %v851
        %v855 = vpop.permute.xlu0 %854
        %v857 = vperm.slane %v855, 0
        %v858 = vadd.f32 %v849, %v857
        %v859 = vxor.u32 %v858, 2147483648
        %v860 = vmul.f32 %v859, 1.442695
        %v861 = vpow.pop %v860
        %v862 = vadd.f32 %v861, 1.0
        %v863 = vrcp.pop %v862
        %v864 = vmul.f32 %v862, %v863
        %v865 = vsub.f32 1.0, %v864
        %v866 = vmul.f32 %v863, %v865
        %v867 = vadd.f32 %v863, %v866
        %vm868 = vweird.f32 %v862
        %vm869 = vweird.f32 %v863
        %vm870 = vmor %vm868, %vm869
        %v871 = vsel %vm870, %v863, %v867
        %v872 = vand.u32 2147483647, %v862
        %vm873 = vcmp.eq.f32.partialorder %v872, 8.507059e+37
        %v874 = vand.u32 %v862, 2147483648
        %v875 = vor.u32 1.1754944e-38, %v874
        %v876 = vsel %vm873, %v875, %v871
        %v877 = vmul.f32 1.0, %v876
        %878 = vst [vmem:[%s564] sm:$0x1] %v877
        %s879 = sand.u32 %s342, 1
        %s880 = scalar_lea.sflag [#allocation6], %s879
        %s881 = sand.u32 %s342, 1
        %s882 = scalar_lea.vmem [#allocation5], %s881
        // Predicated region
        $region153: #{tpu_custom_call.1} parent=143 // pred_check
          %p883 = pneg %p352
        $region154: #{tpu_custom_call.1} parent=143 // pred_check_branch
          %885 = sbr.rel (%p883) target = $region156
        $region155: #{tpu_custom_call.1} parent=143 // pred_region
          %887 = vsyncadd %s880, 0
          %s888 = scalar_lea.hbm %s14, %s30
          %s890 = sshll.u32 %s882, 4
          %s891 = int_to_ptr.vmem [resolvable:$true] %s890
          %s892 = sshll.u32 %s888, 4
          %s893 = int_to_ptr.hbm [resolvable:$true] %s892
          %895 = dma.vmem_to_hbm [thread:$0]  %s891, 16, %s893, %s880
        $region156: #{tpu_custom_call.1} parent=143 // pred_fallthru
          _
      $region144: #{tpu_custom_call.1} parent=5 // pred_fallthru
        _
      %p896 = scmp.le.s32.totalorder 2, %s25
      // Predicated region
      $region157: #{tpu_custom_call.1} parent=5 // pred_check
        %p897 = pneg %p896
      $region158: #{tpu_custom_call.1} parent=5 // pred_check_branch
        %899 = sbr.rel (%p897) target = $region160
      $region159: #{tpu_custom_call.1} parent=5 // pred_region
        %s900 = ssub.s32 %s25, 2
        // Predicated region
        $region161: #{tpu_custom_call.1} parent=159 // pred_check
          %p901 = pneg %p358
        $region162: #{tpu_custom_call.1} parent=159 // pred_check_branch
          %903 = sbr.rel (%p901) target = $region164
        $region163: #{tpu_custom_call.1} parent=159 // pred_region
          %s904 = sand.u32 %s343, 1
          %s905 = scalar_lea.sflag [#allocation6], %s904
          %s906 = sand.u32 %s343, 1
          %s907 = scalar_lea.vmem [#allocation5], %s906
          %909 = dma.done %s905, 16
        $region164: #{tpu_custom_call.1} parent=159 // pred_fallthru
          _
      $region160: #{tpu_custom_call.1} parent=5 // pred_fallthru
        _
    $region6: #{tpu_custom_call.1} parent=1 // loop_footer
      %s29 = sadd.s32 1, %s25
    $region7: #{tpu_custom_call.1} parent=1 // loop_footer_branch
      %24 = sbr.rel target = $region3
    $region8: #{tpu_custom_call.1} parent=1 // loop_exit
      _
    %910 = vsyncpa [#allocation6], 1
    %s911 = scalar_lea.sflag [#allocation6], 1
    %912 = vsyncpa %s911, 1

</llo_original>
